<compile_context>
chip_gen: v7x
topology: tpu7x:2x2x1
jax: 0.10.0
libtpu: 0.0.40
codegen_flags: <defaults>
</compile_context>

<pallas_src>
import functools

import jax
import jax.numpy as jnp
from jax.experimental import pallas as pl
from jax.experimental.pallas import tpu as pltpu


def encoder_kernel(x_ref, w1t_ref, b1_ref, w2t_ref, b2_ref, o_ref):
    # fc1: [TM, F_p] @ [F_p, E_p] -> f32 accumulation on the MXU, bias + ReLU in f32.
    h = jnp.dot(x_ref[...], w1t_ref[...], preferred_element_type=jnp.float32)
    h = jnp.maximum(h + b1_ref[...], 0.0)

    # TODO(synk): F.dropout is identity in eval mode (training=False); a training-mode
    # variant would use pltpu.prng_seed + pltpu.prng_random_bits to build the mask.

    # fc2: cast the activation back to bf16 for the MXU, accumulate in f32,
    # then one fused bias + ReLU + store (single vst per tile).
    y = jnp.dot(h.astype(jnp.bfloat16), w2t_ref[...],
                preferred_element_type=jnp.float32)
    o_ref[...] = jnp.maximum(y + b2_ref[...], 0.0).astype(o_ref.dtype)


def _round_up(v, m):
    return ((v + m - 1) // m) * m


@functools.partial(jax.jit, static_argnames=("block_rows",))
def encoder_forward(x, adj, w1, b1, w2, b2, *, block_rows=256):
    """x: [N, nfeat]; adj: [N, N] (unused, kept for signature parity).

    w1: [nembed, nfeat], b1: [nembed]   (PyTorch Linear convention)
    w2: [nembed, nhid],  b2: [nembed]   (forward requires nhid == nembed)
    Returns [N, nembed] float32.
    """
    del adj  # never used in the PyTorch forward

    N, nfeat = x.shape
    nembed, nfeat_w = w1.shape
    nembed2, nhid = w2.shape
    assert nfeat_w == nfeat, "fc1 weight in_features must match x"
    assert nembed2 == nembed, "fc1/fc2 must share nembed"
    assert nhid == nembed, "fc2 consumes fc1's output: requires nhid == nembed"

    # Lane-dense padding: contraction / output dims -> multiples of 128,
    # rows -> multiple of the row tile (zero rows are sliced off at the end).
    F_p = _round_up(nfeat, 128)
    E_p = _round_up(nembed, 128)
    TM = min(block_rows, _round_up(N, 8))
    N_p = TM * pl.cdiv(N, TM)
    grid = (N_p // TM,)

    # Zero-padded, pre-transposed, bf16 matmul operands (host-side, zero-cost change).
    x_p = jnp.zeros((N_p, F_p), jnp.float32).at[:N, :nfeat].set(x).astype(jnp.bfloat16)
    w1t = jnp.zeros((F_p, E_p), jnp.float32).at[:nfeat, :nembed].set(w1.T).astype(jnp.bfloat16)
    w2t = jnp.zeros((E_p, E_p), jnp.float32).at[:nhid, :nembed].set(w2.T).astype(jnp.bfloat16)
    # Biases stay f32 (epilogue is f32 on the VPU).
    b1_p = jnp.zeros((1, E_p), jnp.float32).at[0, :nembed].set(b1)
    b2_p = jnp.zeros((1, E_p), jnp.float32).at[0, :nembed].set(b2)

    out_p = pl.pallas_call(
        encoder_kernel,
        out_shape=jax.ShapeDtypeStruct((N_p, E_p), jnp.float32),
        grid=grid,
        in_specs=[
            pl.BlockSpec((TM, F_p), lambda i: (i, 0)),     # x: streamed row tiles
            pl.BlockSpec((F_p, E_p), lambda i: (0, 0)),    # w1^T: VMEM-resident
            pl.BlockSpec((1, E_p), lambda i: (0, 0)),      # b1:  VMEM-resident
            pl.BlockSpec((E_p, E_p), lambda i: (0, 0)),    # w2^T: VMEM-resident
            pl.BlockSpec((1, E_p), lambda i: (0, 0)),      # b2:  VMEM-resident
            # NOTE: pl.Buffered(1) on the invariant weight specs would halve their
            # VMEM footprint for very large nembed; omitted here for compile safety
            # (footprint is tiny at these sizes and Pallas skips re-DMA of constant
            # block indices anyway).
        ],
        out_specs=pl.BlockSpec((TM, E_p), lambda i: (i, 0)),
        compiler_params=pltpu.CompilerParams(
            # Row tiles are independent -> megacore sharding on v7x.
            dimension_semantics=("parallel",),
            # Below v7x's 64 MiB physical VMEM, above the 32 MiB scoped default.
            vmem_limit_bytes=48 * 1024 * 1024,
        ),
    )(x_p, w1t, b1_p, w2t, b2_p)

    return out_p[:N, :nembed]


def init_linear_params(key, out_features, in_features):
    """Deterministic PyTorch-style Linear init: U(-1/sqrt(in), 1/sqrt(in))."""
    kw, kb = jax.random.split(key)
    bound = 1.0 / (in_features ** 0.5)
    w = jax.random.uniform(kw, (out_features, in_features), jnp.float32, -bound, bound)
    b = jax.random.uniform(kb, (out_features,), jnp.float32, -bound, bound)
    return w, b


if __name__ == "__main__":
    # Small shapes consistent with the module; nhid == nembed is required by the
    # forward (fc2 consumes fc1's output). N spans multiple row tiles so the grid /
    # pipelining path is exercised.
    N, nfeat, nhid = 512, 48, 96
    nembed = nhid
    dropout = 0.5  # inactive in eval mode

    key = jax.random.PRNGKey(0)
    kx, kadj, k1, k2 = jax.random.split(key, 4)

    x = jax.random.normal(kx, (N, nfeat), jnp.float32)
    adj = jax.random.normal(kadj, (N, N), jnp.float32)  # unused, mirrors torch signature

    w1, b1 = init_linear_params(k1, nembed, nfeat)   # fc1: nfeat -> nembed
    w2, b2 = init_linear_params(k2, nembed, nhid)    # fc2: nhid  -> nembed

    out = jax.block_until_ready(encoder_forward(x, adj, w1, b1, w2, b2))
    assert out.shape == (N, nembed)

    # Reference 1: precision-matched (bf16 MXU operands, f32 accumulation) -> tight tol.
    xb, w1tb, w2tb = (x.astype(jnp.bfloat16), w1.T.astype(jnp.bfloat16),
                      w2.T.astype(jnp.bfloat16))
    ref_h = jnp.maximum(jnp.dot(xb, w1tb, preferred_element_type=jnp.float32) + b1, 0.0)
    ref_bf16 = jnp.maximum(
        jnp.dot(ref_h.astype(jnp.bfloat16), w2tb, preferred_element_type=jnp.float32) + b2,
        0.0)
    assert jnp.allclose(out, ref_bf16, atol=2e-3, rtol=2e-3), \
        float(jnp.max(jnp.abs(out - ref_bf16)))

    # Reference 2: pure-f32 PyTorch semantics (dropout identity in eval) -> bf16 tol.
    ref_f32 = jnp.maximum(x @ w1.T + b1, 0.0)
    ref_f32 = jnp.maximum(ref_f32 @ w2.T + b2, 0.0)
    assert jnp.allclose(out, ref_f32, atol=5e-2, rtol=5e-2), \
        float(jnp.max(jnp.abs(out - ref_f32)))

    print("KERNEL_OK")
</pallas_src>

<mosaic_0001>
module attributes {stable_mosaic.version = 11 : i64} {
  func.func @encoder_kernel(%arg0: i32, %arg1: memref<256x128xbf16, #tpu.memory_space<vmem>>, %arg2: memref<128x128xbf16, #tpu.memory_space<vmem>>, %arg3: memref<1x128xf32, #tpu.memory_space<vmem>>, %arg4: memref<128x128xbf16, #tpu.memory_space<vmem>>, %arg5: memref<1x128xf32, #tpu.memory_space<vmem>>, %arg6: memref<256x128xf32, #tpu.memory_space<vmem>>) attributes {dimension_semantics = [#tpu.dimension_semantics<parallel>], iteration_bounds = array<i64: 2>, scalar_prefetch = 0 : i64, scratch_operands = 0 : i64, tpu.core_type = #tpu.core_type<tc>, window_params = [{transform_indices = @transform_0, window_bounds = array<i64: 256, 128>}, {pipeline_mode = #tpu.pipeline_mode<synchronous>, transform_indices = @transform_1, window_bounds = array<i64: 128, 128>}, {pipeline_mode = #tpu.pipeline_mode<synchronous>, transform_indices = @transform_2, window_bounds = array<i64: 1, 128>}, {pipeline_mode = #tpu.pipeline_mode<synchronous>, transform_indices = @transform_3, window_bounds = array<i64: 128, 128>}, {pipeline_mode = #tpu.pipeline_mode<synchronous>, transform_indices = @transform_4, window_bounds = array<i64: 1, 128>}, {transform_indices = @transform_5, window_bounds = array<i64: 256, 128>}]} {
    %c0 = arith.constant 0 : index
    %c0_0 = arith.constant 0 : index
    %0 = vector.load %arg1[%c0, %c0_0] : memref<256x128xbf16, #tpu.memory_space<vmem>>, vector<256x128xbf16>
    %c0_1 = arith.constant 0 : index
    %c0_2 = arith.constant 0 : index
    %1 = vector.load %arg2[%c0_1, %c0_2] : memref<128x128xbf16, #tpu.memory_space<vmem>>, vector<128x128xbf16>
    %cst = arith.constant dense<0.000000e+00> : vector<256x128xf32>
    %2 = tpu.matmul %0, %1, %cst {dimension_numbers = #tpu.dot_dimension_numbers<[1], [0], [0], [1], [0, 0, 1, 1], [], []>} : vector<256x128xbf16>, vector<128x128xbf16>, vector<256x128xf32> -> vector<256x128xf32>
    %c0_3 = arith.constant 0 : index
    %c0_4 = arith.constant 0 : index
    %3 = vector.load %arg3[%c0_3, %c0_4] : memref<1x128xf32, #tpu.memory_space<vmem>>, vector<1x128xf32>
    %4 = vector.broadcast %3 : vector<1x128xf32> to vector<256x128xf32>
    %5 = arith.addf %2, %4 : vector<256x128xf32>
    %cst_5 = arith.constant 0.000000e+00 : f32
    %6 = vector.broadcast %cst_5 : f32 to vector<256x128xf32>
    %7 = arith.maximumf %5, %6 : vector<256x128xf32>
    %8 = arith.truncf %7 : vector<256x128xf32> to vector<256x128xbf16>
    %c0_6 = arith.constant 0 : index
    %c0_7 = arith.constant 0 : index
    %9 = vector.load %arg4[%c0_6, %c0_7] : memref<128x128xbf16, #tpu.memory_space<vmem>>, vector<128x128xbf16>
    %cst_8 = arith.constant dense<0.000000e+00> : vector<256x128xf32>
    %10 = tpu.matmul %8, %9, %cst_8 {dimension_numbers = #tpu.dot_dimension_numbers<[1], [0], [0], [1], [0, 0, 1, 1], [], []>} : vector<256x128xbf16>, vector<128x128xbf16>, vector<256x128xf32> -> vector<256x128xf32>
    %c0_9 = arith.constant 0 : index
    %c0_10 = arith.constant 0 : index
    %11 = vector.load %arg5[%c0_9, %c0_10] : memref<1x128xf32, #tpu.memory_space<vmem>>, vector<1x128xf32>
    %12 = vector.broadcast %11 : vector<1x128xf32> to vector<256x128xf32>
    %13 = arith.addf %10, %12 : vector<256x128xf32>
    %cst_11 = arith.constant 0.000000e+00 : f32
    %14 = vector.broadcast %cst_11 : f32 to vector<256x128xf32>
    %15 = arith.maximumf %13, %14 : vector<256x128xf32>
    %c0_12 = arith.constant 0 : index
    %c0_13 = arith.constant 0 : index
    %16 = vector.load %arg6[%c0_12, %c0_13] : memref<256x128xf32, #tpu.memory_space<vmem>>, vector<256x128xf32>
    tpu.vector_store %arg6[%c0_12, %c0_13], %15 {strides = array<i32>} : memref<256x128xf32, #tpu.memory_space<vmem>>, vector<256x128xf32>,
    return
  }
  func.func @transform_0(%arg0: i32) -> (i32, i32) {
    %c0_i32 = arith.constant 0 : i32
    %c0_i32_0 = arith.constant 0 : i32
    return %arg0, %c0_i32 : i32, i32
  }
  func.func @transform_1(%arg0: i32) -> (i32, i32) {
    %c0_i32 = arith.constant 0 : i32
    %c0_i32_0 = arith.constant 0 : i32
    %c0_i32_1 = arith.constant 0 : i32
    return %c0_i32, %c0_i32_0 : i32, i32
  }
  func.func @transform_2(%arg0: i32) -> (i32, i32) {
    %c0_i32 = arith.constant 0 : i32
    %c0_i32_0 = arith.constant 0 : i32
    %c0_i32_1 = arith.constant 0 : i32
    return %c0_i32, %c0_i32_0 : i32, i32
  }
  func.func @transform_3(%arg0: i32) -> (i32, i32) {
    %c0_i32 = arith.constant 0 : i32
    %c0_i32_0 = arith.constant 0 : i32
    %c0_i32_1 = arith.constant 0 : i32
    return %c0_i32, %c0_i32_0 : i32, i32
  }
  func.func @transform_4(%arg0: i32) -> (i32, i32) {
    %c0_i32 = arith.constant 0 : i32
    %c0_i32_0 = arith.constant 0 : i32
    %c0_i32_1 = arith.constant 0 : i32
    return %c0_i32, %c0_i32_0 : i32, i32
  }
  func.func @transform_5(%arg0: i32) -> (i32, i32) {
    %c0_i32 = arith.constant 0 : i32
    %c0_i32_0 = arith.constant 0 : i32
    return %arg0, %c0_i32 : i32, i32
  }
}

</mosaic_0001>

<llo_original>
// kernel: encoder_forward.1
$region0: #{encoder_forward.1}
  #allocation0 [shape = 'u32[]', space=smem, size = 0x4, offset = 0x4, fixed_abs, tag = 'smem constant byte address 0x4 - core index']
  #allocation1 [shape = 'u32[144,128]{1,0:T(1,128)}', space=vmem, size = 0x12000, scoped, tag = 'internal scratch']
  %s0 = inlined_call_operand.vmem [shape: bf16[512,128], index: 0, kind: input, shape index: {}]
  %s1 = inlined_call_operand.vmem [shape: bf16[128,128], index: 1, kind: input, shape index: {}]
  %s2 = inlined_call_operand.vmem [shape: f32[1,128], index: 2, kind: input, shape index: {}]
  %s3 = inlined_call_operand.vmem [shape: bf16[128,128], index: 3, kind: input, shape index: {}]
  %s4 = inlined_call_operand.vmem [shape: f32[1,128], index: 4, kind: input, shape index: {}]
  %s5 = inlined_call_operand.vmem [shape: f32[512,128], index: 5, kind: output, shape index: {}]
  %s6 = sld [smem:[#allocation0]]
  $region53: #{encoder_forward.1} parent=0
    _
  %s8 = ssub.s32 1, %s6
  %s9 = scalar_select 0, %s8, %s6
  loop: start=0, step=1, limit=4
  $region2: #{encoder_forward.1} parent=0 // loop_pre_header
    _
  $region3: #{encoder_forward.1} parent=0 // loop_header
    %s11 = sphi 0, %s15
    %p12 = scmp.ge.s32.totalorder %s11, 4
    %s21 = sphi 0, %s23
    %s24 = sphi 0, %s21
    %s25 = sphi 0, %s24
    %s41 = sphi 0, %s25
    %s45 = sphi 0, %s45
    %s47 = sphi 0, %s45
    %s48 = sphi 0, %s47
    %s62 = sphi 0, %s48
    %s66 = sphi 0, %s66
    %s68 = sphi 0, %s66
    %s69 = sphi 0, %s68
    %s83 = sphi 0, %s69
    %s87 = sphi 0, %s87
    %s89 = sphi 0, %s87
    %s90 = sphi 0, %s89
    %s104 = sphi 0, %s90
    %s108 = sphi 0, %s108
    %s110 = sphi 0, %s108
    %s111 = sphi 0, %s110
    %s125 = sphi 0, %s111
    %s131 = sphi 0, %s133
    %s134 = sphi 0, %s131
    %s135 = sphi 0, %s134
    %s151 = sphi 0, %s135
  $region4: #{encoder_forward.1} parent=0 // loop_header_branch
    %14 = sbr.rel (%p12) target = $region8
  $region5: #{encoder_forward.1} parent=0 // loop_body
    %s16 = ssub.s32 %s11, 1
    %s17 = ssub.s32 %s11, 2
    %s18 = sadd.s32 %s11, 1
    %s19 = ssub.s32 %s11, %s18
    %p20 = scmp.eq.s32.totalorder %s19, 0
    %s22 = sadd.s32 %s21, 1
    %s23 = scalar_select %p20, %s21, %s22
    %p26 = pneg %p20
    %p27 = scmp.eq.s32.totalorder %s11, 1
    %p28 = por %p26, %p27
    %p29 = scmp.ne.s32.totalorder %s21, %s24
    %p30 = scmp.eq.s32.totalorder %s11, 0
    %p31 = por %p29, %p30
    %p32 = scmp.ne.s32.totalorder %s21, %s24
    %p33 = scmp.eq.s32.totalorder %s16, 1
    %p34 = por %p32, %p33
    %p35 = scmp.ne.s32.totalorder %s24, %s25
    %p36 = scmp.eq.s32.totalorder %s16, 0
    %p37 = por %p35, %p36
    %p38 = scmp.ne.s32.totalorder %s24, %s25
    %p39 = scmp.eq.s32.totalorder %s17, 1
    %p40 = por %p38, %p39
    %p42 = scmp.ne.s32.totalorder %s25, %s41
    %p43 = scmp.eq.s32.totalorder %s17, 0
    %p44 = por %p42, %p43
    %s46 = sadd.s32 %s45, 1
    %p49 = scmp.eq.s32.totalorder %s11, 1
    %p50 = scmp.ne.s32.totalorder %s45, %s47
    %p51 = scmp.eq.s32.totalorder %s11, 0
    %p52 = por %p50, %p51
    %p53 = scmp.ne.s32.totalorder %s45, %s47
    %p54 = scmp.eq.s32.totalorder %s16, 1
    %p55 = por %p53, %p54
    %p56 = scmp.ne.s32.totalorder %s47, %s48
    %p57 = scmp.eq.s32.totalorder %s16, 0
    %p58 = por %p56, %p57
    %p59 = scmp.ne.s32.totalorder %s47, %s48
    %p60 = scmp.eq.s32.totalorder %s17, 1
    %p61 = por %p59, %p60
    %p63 = scmp.ne.s32.totalorder %s48, %s62
    %p64 = scmp.eq.s32.totalorder %s17, 0
    %p65 = por %p63, %p64
    %s67 = sadd.s32 %s66, 1
    %p70 = scmp.eq.s32.totalorder %s11, 1
    %p71 = scmp.ne.s32.totalorder %s66, %s68
    %p72 = scmp.eq.s32.totalorder %s11, 0
    %p73 = por %p71, %p72
    %p74 = scmp.ne.s32.totalorder %s66, %s68
    %p75 = scmp.eq.s32.totalorder %s16, 1
    %p76 = por %p74, %p75
    %p77 = scmp.ne.s32.totalorder %s68, %s69
    %p78 = scmp.eq.s32.totalorder %s16, 0
    %p79 = por %p77, %p78
    %p80 = scmp.ne.s32.totalorder %s68, %s69
    %p81 = scmp.eq.s32.totalorder %s17, 1
    %p82 = por %p80, %p81
    %p84 = scmp.ne.s32.totalorder %s69, %s83
    %p85 = scmp.eq.s32.totalorder %s17, 0
    %p86 = por %p84, %p85
    %s88 = sadd.s32 %s87, 1
    %p91 = scmp.eq.s32.totalorder %s11, 1
    %p92 = scmp.ne.s32.totalorder %s87, %s89
    %p93 = scmp.eq.s32.totalorder %s11, 0
    %p94 = por %p92, %p93
    %p95 = scmp.ne.s32.totalorder %s87, %s89
    %p96 = scmp.eq.s32.totalorder %s16, 1
    %p97 = por %p95, %p96
    %p98 = scmp.ne.s32.totalorder %s89, %s90
    %p99 = scmp.eq.s32.totalorder %s16, 0
    %p100 = por %p98, %p99
    %p101 = scmp.ne.s32.totalorder %s89, %s90
    %p102 = scmp.eq.s32.totalorder %s17, 1
    %p103 = por %p101, %p102
    %p105 = scmp.ne.s32.totalorder %s90, %s104
    %p106 = scmp.eq.s32.totalorder %s17, 0
    %p107 = por %p105, %p106
    %s109 = sadd.s32 %s108, 1
    %p112 = scmp.eq.s32.totalorder %s11, 1
    %p113 = scmp.ne.s32.totalorder %s108, %s110
    %p114 = scmp.eq.s32.totalorder %s11, 0
    %p115 = por %p113, %p114
    %p116 = scmp.ne.s32.totalorder %s108, %s110
    %p117 = scmp.eq.s32.totalorder %s16, 1
    %p118 = por %p116, %p117
    %p119 = scmp.ne.s32.totalorder %s110, %s111
    %p120 = scmp.eq.s32.totalorder %s16, 0
    %p121 = por %p119, %p120
    %p122 = scmp.ne.s32.totalorder %s110, %s111
    %p123 = scmp.eq.s32.totalorder %s17, 1
    %p124 = por %p122, %p123
    %p126 = scmp.ne.s32.totalorder %s111, %s125
    %p127 = scmp.eq.s32.totalorder %s17, 0
    %p128 = por %p126, %p127
    %s129 = ssub.s32 %s11, %s18
    %p130 = scmp.eq.s32.totalorder %s129, 0
    %s132 = sadd.s32 %s131, 1
    %s133 = scalar_select %p130, %s131, %s132
    %p136 = pneg %p130
    %p137 = scmp.eq.s32.totalorder %s11, 1
    %p138 = por %p136, %p137
    %p139 = scmp.ne.s32.totalorder %s131, %s134
    %p140 = scmp.eq.s32.totalorder %s11, 0
    %p141 = por %p139, %p140
    %p142 = scmp.ne.s32.totalorder %s131, %s134
    %p143 = scmp.eq.s32.totalorder %s16, 1
    %p144 = por %p142, %p143
    %p145 = scmp.ne.s32.totalorder %s134, %s135
    %p146 = scmp.eq.s32.totalorder %s16, 0
    %p147 = por %p145, %p146
    %p148 = scmp.ne.s32.totalorder %s134, %s135
    %p149 = scmp.eq.s32.totalorder %s17, 1
    %p150 = por %p148, %p149
    %p152 = scmp.ne.s32.totalorder %s135, %s151
    %p153 = scmp.eq.s32.totalorder %s17, 0
    %p154 = por %p152, %p153
    %p155 = scmp.le.s32.totalorder 1, %s11
    %p156 = scmp.lt.s32.totalorder %s11, 3
    %p157 = pnand %p155, %p156
    %p158 = pneg %p157
    // Predicated region
    $region9: #{encoder_forward.1} parent=5 // pred_check
      _
    $region10: #{encoder_forward.1} parent=5 // pred_check_branch
      %160 = sbr.rel (%p157) target = $region12
    $region11: #{encoder_forward.1} parent=5 // pred_region
      %s161 = ssub.s32 %s11, 1
      // Predicated region
      $region13: #{encoder_forward.1} parent=11 // pred_check
        %p162 = pneg %p58
      $region14: #{encoder_forward.1} parent=11 // pred_check_branch
        %164 = sbr.rel (%p162) target = $region16
      $region15: #{encoder_forward.1} parent=11 // pred_region
        _
      $region16: #{encoder_forward.1} parent=11 // pred_fallthru
        _
      // Predicated region
      $region17: #{encoder_forward.1} parent=11 // pred_check
        %p165 = pneg %p79
      $region18: #{encoder_forward.1} parent=11 // pred_check_branch
        %167 = sbr.rel (%p165) target = $region20
      $region19: #{encoder_forward.1} parent=11 // pred_region
        _
      $region20: #{encoder_forward.1} parent=11 // pred_fallthru
        _
      // Predicated region
      $region21: #{encoder_forward.1} parent=11 // pred_check
        %p168 = pneg %p100
      $region22: #{encoder_forward.1} parent=11 // pred_check_branch
        %170 = sbr.rel (%p168) target = $region24
      $region23: #{encoder_forward.1} parent=11 // pred_region
        _
      $region24: #{encoder_forward.1} parent=11 // pred_fallthru
        _
      // Predicated region
      $region25: #{encoder_forward.1} parent=11 // pred_check
        %p171 = pneg %p121
      $region26: #{encoder_forward.1} parent=11 // pred_check_branch
        %173 = sbr.rel (%p171) target = $region28
      $region27: #{encoder_forward.1} parent=11 // pred_region
        _
      $region28: #{encoder_forward.1} parent=11 // pred_fallthru
        _
    $region12: #{encoder_forward.1} parent=5 // pred_fallthru
      _
    %p174 = scmp.lt.s32.totalorder %s11, 2
    // Predicated region
    $region29: #{encoder_forward.1} parent=5 // pred_check
      %p175 = pneg %p174
    $region30: #{encoder_forward.1} parent=5 // pred_check_branch
      %177 = sbr.rel (%p175) target = $region32
    $region31: #{encoder_forward.1} parent=5 // pred_region
      // Predicated region
      $region33: #{encoder_forward.1} parent=31 // pred_check
        %p178 = pneg %p31
      $region34: #{encoder_forward.1} parent=31 // pred_check_branch
        %180 = sbr.rel (%p178) target = $region36
      $region35: #{encoder_forward.1} parent=31 // pred_region
        %s181 = smul.u32 32, %s11
        %p182 = scmp.lt.s32.totalorder %s181, 63
        %s183 = scalar_select %p182, %s181, 63
        %s184 = smul.addr %s183, 4
        %s185 = scalar_lea.vmem %s0, %s184
        %s186 = smul.u32 32, %s11
      $region36: #{encoder_forward.1} parent=31 // pred_fallthru
        _
    $region32: #{encoder_forward.1} parent=5 // pred_fallthru
      _
    %p187 = scmp.le.s32.totalorder 1, %s11
    %p188 = scmp.lt.s32.totalorder %s11, 3
    %p189 = pnand %p187, %p188
    %p190 = pneg %p189
    // Predicated region
    $region37: #{encoder_forward.1} parent=5 // pred_check
      _
    $region38: #{encoder_forward.1} parent=5 // pred_check_branch
      %192 = sbr.rel (%p189) target = $region40
    $region39: #{encoder_forward.1} parent=5 // pred_region
      %s193 = ssub.s32 %s11, 1
      %s194 = smul.u32 32, %s16
      %p195 = scmp.lt.s32.totalorder %s194, 63
      %s196 = scalar_select %p195, %s194, 63
      %s197 = smul.addr %s196, 4
      %s198 = scalar_lea.vmem %s0, %s197
      %p199 = pneg %p37
      %p200 = pneg %p34
      %p201 = pneg %p58
      %p202 = pneg %p55
      %p203 = pneg %p79
      %p204 = pneg %p76
      %p205 = pneg %p100
      %p206 = pneg %p97
      %p207 = pneg %p121
      %p208 = pneg %p118
      %p209 = pneg %p147
      %p210 = pneg %p144
      %s211 = smul.u32 32, %s16
      %p212 = scmp.lt.s32.totalorder %s211, 63
      %s213 = scalar_select %p212, %s211, 63
      %s214 = smul.addr %s213, 8
      %s215 = scalar_lea.vmem %s5, %s214
      %s216 = smul.u32 32, %s16
      %p217 = scmp.lt.s32.totalorder %s216, 63
      %s218 = scalar_select %p217, %s216, 63
      %s219 = smul.addr %s218, 4
      %s220 = scalar_lea.vmem %s0, %s219
      %s221 = smul.u32 32, %s16
      %s222 = smul.u32 32, %s16
      %p223 = scmp.lt.s32.totalorder %s222, 63
      %s224 = scalar_select %p223, %s222, 63
      %s225 = smul.addr %s224, 8
      %s226 = scalar_lea.vmem %s5, %s225
      %s227 = smul.u32 32, %s16
      %v229 = vld [vmem:[%s220] sm:$0xf]
      %v230 = vld [vmem:[%s220 + $0x4] sm:$0xf]
      %v231 = vld [vmem:[%s220 + $0x8] sm:$0xf]
      %v232 = vld [vmem:[%s220 + $0xc] sm:$0xf]
      %v233 = vld [vmem:[%s220 + $0x10] sm:$0xf]
      %v234 = vld [vmem:[%s220 + $0x14] sm:$0xf]
      %v235 = vld [vmem:[%s220 + $0x18] sm:$0xf]
      %v236 = vld [vmem:[%s220 + $0x1c] sm:$0xf]
      %v237 = vld [vmem:[%s220 + $0x20] sm:$0xf]
      %v238 = vld [vmem:[%s220 + $0x24] sm:$0xf]
      %v239 = vld [vmem:[%s220 + $0x28] sm:$0xf]
      %v240 = vld [vmem:[%s220 + $0x2c] sm:$0xf]
      %v241 = vld [vmem:[%s220 + $0x30] sm:$0xf]
      %v242 = vld [vmem:[%s220 + $0x34] sm:$0xf]
      %v243 = vld [vmem:[%s220 + $0x38] sm:$0xf]
      %v244 = vld [vmem:[%s220 + $0x3c] sm:$0xf]
      %v245 = vld [vmem:[%s220 + $0x40] sm:$0xf]
      %v246 = vld [vmem:[%s220 + $0x44] sm:$0xf]
      %v247 = vld [vmem:[%s220 + $0x48] sm:$0xf]
      %v248 = vld [vmem:[%s220 + $0x4c] sm:$0xf]
      %v249 = vld [vmem:[%s220 + $0x50] sm:$0xf]
      %v250 = vld [vmem:[%s220 + $0x54] sm:$0xf]
      %v251 = vld [vmem:[%s220 + $0x58] sm:$0xf]
      %v252 = vld [vmem:[%s220 + $0x5c] sm:$0xf]
      %v253 = vld [vmem:[%s220 + $0x60] sm:$0xf]
      %v254 = vld [vmem:[%s220 + $0x64] sm:$0xf]
      %v255 = vld [vmem:[%s220 + $0x68] sm:$0xf]
      %v256 = vld [vmem:[%s220 + $0x6c] sm:$0xf]
      %v257 = vld [vmem:[%s220 + $0x70] sm:$0xf]
      %v258 = vld [vmem:[%s220 + $0x74] sm:$0xf]
      %v259 = vld [vmem:[%s220 + $0x78] sm:$0xf]
      %v260 = vld [vmem:[%s220 + $0x7c] sm:$0xf]
      %v261 = vld [vmem:[%s1] sm:$0xf]
      %v262 = vld [vmem:[%s1 + $0x4] sm:$0xf]
      %v263 = vld [vmem:[%s1 + $0x8] sm:$0xf]
      %v264 = vld [vmem:[%s1 + $0xc] sm:$0xf]
      %v265 = vld [vmem:[%s1 + $0x10] sm:$0xf]
      %v266 = vld [vmem:[%s1 + $0x14] sm:$0xf]
      %v267 = vld [vmem:[%s1 + $0x18] sm:$0xf]
      %v268 = vld [vmem:[%s1 + $0x1c] sm:$0xf]
      %v269 = vld [vmem:[%s1 + $0x20] sm:$0xf]
      %v270 = vld [vmem:[%s1 + $0x24] sm:$0xf]
      %v271 = vld [vmem:[%s1 + $0x28] sm:$0xf]
      %v272 = vld [vmem:[%s1 + $0x2c] sm:$0xf]
      %v273 = vld [vmem:[%s1 + $0x30] sm:$0xf]
      %v274 = vld [vmem:[%s1 + $0x34] sm:$0xf]
      %v275 = vld [vmem:[%s1 + $0x38] sm:$0xf]
      %v276 = vld [vmem:[%s1 + $0x3c] sm:$0xf]
      %v277 = vld [vmem:[%s2] sm:$0x1]
      %v279 = vlaneseq
      %v280 = vshrl.u32 %v279, 7
      %v281 = vsub.s32 0, %v280
      %v282 = vrot.slane %v277, %v281
      %v316 = vunpack.c.l.b16 %v229
      %v317 = vunpack.c.l.b16 %v230
      %v318 = vunpack.c.l.b16 %v231
      %v319 = vunpack.c.l.b16 %v232
      %v320 = vunpack.c.l.b16 %v233
      %v321 = vunpack.c.l.b16 %v234
      %v322 = vunpack.c.l.b16 %v235
      %v323 = vunpack.c.l.b16 %v236
      %v324 = vunpack.c.l.b16 %v237
      %v325 = vunpack.c.l.b16 %v238
      %v326 = vunpack.c.l.b16 %v239
      %v327 = vunpack.c.l.b16 %v240
      %v328 = vunpack.c.l.b16 %v241
      %v329 = vunpack.c.l.b16 %v242
      %v330 = vunpack.c.l.b16 %v243
      %v331 = vunpack.c.l.b16 %v244
      %v332 = vunpack.c.l.b16 %v245
      %v333 = vunpack.c.l.b16 %v246
      %v334 = vunpack.c.l.b16 %v247
      %v335 = vunpack.c.l.b16 %v248
      %v336 = vunpack.c.l.b16 %v249
      %v337 = vunpack.c.l.b16 %v250
      %v338 = vunpack.c.l.b16 %v251
      %v339 = vunpack.c.l.b16 %v252
      %v340 = vunpack.c.l.b16 %v253
      %v341 = vunpack.c.l.b16 %v254
      %v342 = vunpack.c.l.b16 %v255
      %v343 = vunpack.c.l.b16 %v256
      %v344 = vunpack.c.l.b16 %v257
      %v345 = vunpack.c.l.b16 %v258
      %v346 = vunpack.c.l.b16 %v259
      %v347 = vunpack.c.l.b16 %v260
      %v348 = vpack.c.b16 %v317, %v316
      %v349 = vpack.c.b16 %v319, %v318
      %v350 = vpack.c.b16 %v321, %v320
      %v351 = vpack.c.b16 %v323, %v322
      %v352 = vpack.c.b16 %v325, %v324
      %v353 = vpack.c.b16 %v327, %v326
      %v354 = vpack.c.b16 %v329, %v328
      %v355 = vpack.c.b16 %v331, %v330
      %v356 = vpack.c.b16 %v333, %v332
      %v357 = vpack.c.b16 %v335, %v334
      %v358 = vpack.c.b16 %v337, %v336
      %v359 = vpack.c.b16 %v339, %v338
      %v360 = vpack.c.b16 %v341, %v340
      %v361 = vpack.c.b16 %v343, %v342
      %v362 = vpack.c.b16 %v345, %v344
      %v363 = vpack.c.b16 %v347, %v346
      %v396 = vunpack.c.l.b16 %v261
      %v397 = vunpack.c.l.b16 %v262
      %v398 = vunpack.c.l.b16 %v263
      %v399 = vunpack.c.l.b16 %v264
      %v400 = vunpack.c.l.b16 %v265
      %v401 = vunpack.c.l.b16 %v266
      %v402 = vunpack.c.l.b16 %v267
      %v403 = vunpack.c.l.b16 %v268
      %v404 = vunpack.c.l.b16 %v269
      %v405 = vunpack.c.l.b16 %v270
      %v406 = vunpack.c.l.b16 %v271
      %v407 = vunpack.c.l.b16 %v272
      %v408 = vunpack.c.l.b16 %v273
      %v409 = vunpack.c.l.b16 %v274
      %v410 = vunpack.c.l.b16 %v275
      %v411 = vunpack.c.l.b16 %v276
      %v412 = vpack.c.b16 %v397, %v396
      %v413 = vpack.c.b16 %v399, %v398
      %v414 = vpack.c.b16 %v401, %v400
      %v415 = vpack.c.b16 %v403, %v402
      %v416 = vpack.c.b16 %v405, %v404
      %v417 = vpack.c.b16 %v407, %v406
      %v418 = vpack.c.b16 %v409, %v408
      %v419 = vpack.c.b16 %v411, %v410
      %428 = vmatprep.subr.bf16.mxu0 0
      %429 = vmatpush1.bf16.msra.mxu0 %v412
      %430 = vmatprep.subr.bf16.mxu0 0
      %431 = vmatpush1.bf16.msra.mxu0 %v413
      %432 = vmatprep.subr.bf16.mxu0 0
      %433 = vmatpush1.bf16.msra.mxu0 %v414
      %434 = vmatprep.subr.bf16.mxu0 0
      %435 = vmatpush1.bf16.msra.mxu0 %v415
      %436 = vmatprep.subr.bf16.mxu0 0
      %437 = vmatpush1.bf16.msra.mxu0 %v416
      %438 = vmatprep.subr.bf16.mxu0 0
      %439 = vmatpush1.bf16.msra.mxu0 %v417
      %440 = vmatprep.subr.bf16.mxu0 0
      %441 = vmatpush1.bf16.msra.mxu0 %v418
      %442 = vmatprep.subr.bf16.mxu0 0
      %443 = vmatpush1.bf16.msra.mxu0 %v419
      %444 = vmatprep.subr.bf16.mxu0 0
      %445 = vmatpush1.bf16.msra.mxu0 0
      %446 = vmatprep.subr.bf16.mxu0 0
      %447 = vmatpush1.bf16.msra.mxu0 0
      %448 = vmatprep.subr.bf16.mxu0 0
      %449 = vmatpush1.bf16.msra.mxu0 0
      %450 = vmatprep.subr.bf16.mxu0 0
      %451 = vmatpush1.bf16.msra.mxu0 0
      %452 = vmatprep.subr.bf16.mxu0 0
      %453 = vmatpush1.bf16.msra.mxu0 0
      %454 = vmatprep.subr.bf16.mxu0 0
      %455 = vmatpush1.bf16.msra.mxu0 0
      %456 = vmatprep.subr.bf16.mxu0 0
      %457 = vmatpush1.bf16.msra.mxu0 0
      %458 = vmatprep.subr.bf16.mxu0 0
      %459 = vmatpush1.bf16.msra.mxu0 0
      %460 = vmatprep.mubr.bf16.mxu0 0
      %461 = vmatmul.mubr.bf16.gmra.mrb[0].mxu0 %v348
      %v462 = vpop.f32.mrb[0].mxu0
      %v463 = vadd.f32 %v282, %v462
      %v464 = vpop.f32.mrb[0].mxu0
      %v465 = vpop.f32.mrb[0].mxu0
      %v466 = vadd.f32 %v282, %v465
      %v467 = vpop.f32.mrb[0].mxu0
      %468 = vmatprep.mubr.bf16.mxu0 0
      %469 = vmatmul.mubr.bf16.gmra.mrb[0].mxu0 %v349
      %v470 = vpop.f32.mrb[0].mxu0
      %v471 = vadd.f32 %v282, %v470
      %v472 = vpop.f32.mrb[0].mxu0
      %v473 = vpop.f32.mrb[0].mxu0
      %v474 = vadd.f32 %v282, %v473
      %v475 = vpop.f32.mrb[0].mxu0
      %476 = vmatprep.mubr.bf16.mxu0 0
      %477 = vmatmul.mubr.bf16.gmra.mrb[0].mxu0 %v350
      %v478 = vpop.f32.mrb[0].mxu0
      %v479 = vadd.f32 %v282, %v478
      %v480 = vpop.f32.mrb[0].mxu0
      %v481 = vpop.f32.mrb[0].mxu0
      %v482 = vadd.f32 %v282, %v481
      %v483 = vpop.f32.mrb[0].mxu0
      %484 = vmatprep.mubr.bf16.mxu0 0
      %485 = vmatmul.mubr.bf16.gmra.mrb[0].mxu0 %v351
      %v486 = vpop.f32.mrb[0].mxu0
      %v487 = vadd.f32 %v282, %v486
      %v488 = vpop.f32.mrb[0].mxu0
      %v489 = vpop.f32.mrb[0].mxu0
      %v490 = vadd.f32 %v282, %v489
      %v491 = vpop.f32.mrb[0].mxu0
      %492 = vmatprep.mubr.bf16.mxu0 0
      %493 = vmatmul.mubr.bf16.gmra.mrb[0].mxu0 %v352
      %v494 = vpop.f32.mrb[0].mxu0
      %v495 = vadd.f32 %v282, %v494
      %v496 = vpop.f32.mrb[0].mxu0
      %v497 = vpop.f32.mrb[0].mxu0
      %v498 = vadd.f32 %v282, %v497
      %v499 = vpop.f32.mrb[0].mxu0
      %500 = vmatprep.mubr.bf16.mxu0 0
      %501 = vmatmul.mubr.bf16.gmra.mrb[0].mxu0 %v353
      %v502 = vpop.f32.mrb[0].mxu0
      %v503 = vadd.f32 %v282, %v502
      %v504 = vpop.f32.mrb[0].mxu0
      %v505 = vpop.f32.mrb[0].mxu0
      %v506 = vadd.f32 %v282, %v505
      %v507 = vpop.f32.mrb[0].mxu0
      %508 = vmatprep.mubr.bf16.mxu0 0
      %509 = vmatmul.mubr.bf16.gmra.mrb[0].mxu0 %v354
      %v510 = vpop.f32.mrb[0].mxu0
      %v511 = vadd.f32 %v282, %v510
      %v512 = vpop.f32.mrb[0].mxu0
      %v513 = vpop.f32.mrb[0].mxu0
      %v514 = vadd.f32 %v282, %v513
      %v515 = vpop.f32.mrb[0].mxu0
      %516 = vmatprep.mubr.bf16.mxu0 0
      %517 = vmatmul.mubr.bf16.gmra.mrb[0].mxu0 %v355
      %v518 = vpop.f32.mrb[0].mxu0
      %v519 = vadd.f32 %v282, %v518
      %v520 = vpop.f32.mrb[0].mxu0
      %v521 = vpop.f32.mrb[0].mxu0
      %v522 = vadd.f32 %v282, %v521
      %v523 = vpop.f32.mrb[0].mxu0
      %524 = vmatprep.mubr.bf16.mxu0 0
      %525 = vmatmul.mubr.bf16.gmra.mrb[0].mxu0 %v356
      %v526 = vpop.f32.mrb[0].mxu0
      %v527 = vadd.f32 %v282, %v526
      %v528 = vpop.f32.mrb[0].mxu0
      %v529 = vpop.f32.mrb[0].mxu0
      %v530 = vadd.f32 %v282, %v529
      %v531 = vpop.f32.mrb[0].mxu0
      %532 = vmatprep.mubr.bf16.mxu0 0
      %533 = vmatmul.mubr.bf16.gmra.mrb[0].mxu0 %v357
      %v534 = vpop.f32.mrb[0].mxu0
      %v535 = vadd.f32 %v282, %v534
      %v536 = vpop.f32.mrb[0].mxu0
      %v537 = vpop.f32.mrb[0].mxu0
      %v538 = vadd.f32 %v282, %v537
      %v539 = vpop.f32.mrb[0].mxu0
      %540 = vmatprep.mubr.bf16.mxu0 0
      %541 = vmatmul.mubr.bf16.gmra.mrb[0].mxu0 %v358
      %v542 = vpop.f32.mrb[0].mxu0
      %v543 = vadd.f32 %v282, %v542
      %v544 = vpop.f32.mrb[0].mxu0
      %v545 = vpop.f32.mrb[0].mxu0
      %v546 = vadd.f32 %v282, %v545
      %v547 = vpop.f32.mrb[0].mxu0
      %548 = vmatprep.mubr.bf16.mxu0 0
      %549 = vmatmul.mubr.bf16.gmra.mrb[0].mxu0 %v359
      %v550 = vpop.f32.mrb[0].mxu0
      %v551 = vadd.f32 %v282, %v550
      %v552 = vpop.f32.mrb[0].mxu0
      %v553 = vpop.f32.mrb[0].mxu0
      %v554 = vadd.f32 %v282, %v553
      %v555 = vpop.f32.mrb[0].mxu0
      %556 = vmatprep.mubr.bf16.mxu0 0
      %557 = vmatmul.mubr.bf16.gmra.mrb[0].mxu0 %v360
      %v558 = vpop.f32.mrb[0].mxu0
      %v559 = vadd.f32 %v282, %v558
      %v560 = vpop.f32.mrb[0].mxu0
      %v561 = vpop.f32.mrb[0].mxu0
      %v562 = vadd.f32 %v282, %v561
      %v563 = vpop.f32.mrb[0].mxu0
      %564 = vmatprep.mubr.bf16.mxu0 0
      %565 = vmatmul.mubr.bf16.gmra.mrb[0].mxu0 %v361
      %v566 = vpop.f32.mrb[0].mxu0
      %v567 = vadd.f32 %v282, %v566
      %v568 = vpop.f32.mrb[0].mxu0
      %v569 = vpop.f32.mrb[0].mxu0
      %v570 = vadd.f32 %v282, %v569
      %v571 = vpop.f32.mrb[0].mxu0
      %572 = vmatprep.mubr.bf16.mxu0 0
      %573 = vmatmul.mubr.bf16.gmra.mrb[0].mxu0 %v362
      %v574 = vpop.f32.mrb[0].mxu0
      %v575 = vadd.f32 %v282, %v574
      %v576 = vpop.f32.mrb[0].mxu0
      %v577 = vpop.f32.mrb[0].mxu0
      %v578 = vadd.f32 %v282, %v577
      %v579 = vpop.f32.mrb[0].mxu0
      %580 = vmatprep.mubr.bf16.mxu0 0
      %581 = vmatmul.mubr.bf16.gmra.mrb[0].mxu0 %v363
      %v582 = vpop.f32.mrb[0].mxu0
      %v583 = vadd.f32 %v282, %v582
      %v584 = vpop.f32.mrb[0].mxu0
      %v585 = vpop.f32.mrb[0].mxu0
      %v586 = vadd.f32 %v282, %v585
      %v587 = vpop.f32.mrb[0].mxu0
      %588 = vdwg.mxu0
      %v589 = vmax.f32 %v463, 0.0
      %v590 = vmax.f32 %v466, 0.0
      %v591 = vmax.f32 %v471, 0.0
      %v592 = vmax.f32 %v474, 0.0
      %v593 = vmax.f32 %v479, 0.0
      %v594 = vmax.f32 %v482, 0.0
      %v595 = vmax.f32 %v487, 0.0
      %v596 = vmax.f32 %v490, 0.0
      %v597 = vmax.f32 %v495, 0.0
      %v598 = vmax.f32 %v498, 0.0
      %v599 = vmax.f32 %v503, 0.0
      %v600 = vmax.f32 %v506, 0.0
      %v601 = vmax.f32 %v511, 0.0
      %v602 = vmax.f32 %v514, 0.0
      %v603 = vmax.f32 %v519, 0.0
      %v604 = vmax.f32 %v522, 0.0
      %v605 = vmax.f32 %v527, 0.0
      %v606 = vmax.f32 %v530, 0.0
      %v607 = vmax.f32 %v535, 0.0
      %v608 = vmax.f32 %v538, 0.0
      %v609 = vmax.f32 %v543, 0.0
      %v610 = vmax.f32 %v546, 0.0
      %v611 = vmax.f32 %v551, 0.0
      %v612 = vmax.f32 %v554, 0.0
      %v613 = vmax.f32 %v559, 0.0
      %v614 = vmax.f32 %v562, 0.0
      %v615 = vmax.f32 %v567, 0.0
      %v616 = vmax.f32 %v570, 0.0
      %v617 = vmax.f32 %v575, 0.0
      %v618 = vmax.f32 %v578, 0.0
      %v619 = vmax.f32 %v583, 0.0
      %v620 = vmax.f32 %v586, 0.0
      %v621 = vpack.c.bf16 %v590, %v589
      %v622 = vpack.c.bf16 %v592, %v591
      %v623 = vpack.c.bf16 %v594, %v593
      %v624 = vpack.c.bf16 %v596, %v595
      %v625 = vpack.c.bf16 %v598, %v597
      %v626 = vpack.c.bf16 %v600, %v599
      %v627 = vpack.c.bf16 %v602, %v601
      %v628 = vpack.c.bf16 %v604, %v603
      %v629 = vpack.c.bf16 %v606, %v605
      %v630 = vpack.c.bf16 %v608, %v607
      %v631 = vpack.c.bf16 %v610, %v609
      %v632 = vpack.c.bf16 %v612, %v611
      %v633 = vpack.c.bf16 %v614, %v613
      %v634 = vpack.c.bf16 %v616, %v615
      %v635 = vpack.c.bf16 %v618, %v617
      %v636 = vpack.c.bf16 %v620, %v619
      %v637 = vld [vmem:[%s3] sm:$0xf]
      %v638 = vld [vmem:[%s3 + $0x4] sm:$0xf]
      %v639 = vld [vmem:[%s3 + $0x8] sm:$0xf]
      %v640 = vld [vmem:[%s3 + $0xc] sm:$0xf]
      %v641 = vld [vmem:[%s3 + $0x10] sm:$0xf]
      %v642 = vld [vmem:[%s3 + $0x14] sm:$0xf]
      %v643 = vld [vmem:[%s3 + $0x18] sm:$0xf]
      %v644 = vld [vmem:[%s3 + $0x1c] sm:$0xf]
      %v645 = vld [vmem:[%s3 + $0x20] sm:$0xf]
      %v646 = vld [vmem:[%s3 + $0x24] sm:$0xf]
      %v647 = vld [vmem:[%s3 + $0x28] sm:$0xf]
      %v648 = vld [vmem:[%s3 + $0x2c] sm:$0xf]
      %v649 = vld [vmem:[%s3 + $0x30] sm:$0xf]
      %v650 = vld [vmem:[%s3 + $0x34] sm:$0xf]
      %v651 = vld [vmem:[%s3 + $0x38] sm:$0xf]
      %v652 = vld [vmem:[%s3 + $0x3c] sm:$0xf]
      %v653 = vld [vmem:[%s4] sm:$0x1]
      %v655 = vlaneseq
      %v656 = vshrl.u32 %v655, 7
      %v657 = vsub.s32 0, %v656
      %v658 = vrot.slane %v653, %v657
      %v676 = vunpack.c.l.b16 %v637
      %v677 = vunpack.c.l.b16 %v638
      %v678 = vunpack.c.l.b16 %v639
      %v679 = vunpack.c.l.b16 %v640
      %v680 = vunpack.c.l.b16 %v641
      %v681 = vunpack.c.l.b16 %v642
      %v682 = vunpack.c.l.b16 %v643
      %v683 = vunpack.c.l.b16 %v644
      %v684 = vunpack.c.l.b16 %v645
      %v685 = vunpack.c.l.b16 %v646
      %v686 = vunpack.c.l.b16 %v647
      %v687 = vunpack.c.l.b16 %v648
      %v688 = vunpack.c.l.b16 %v649
      %v689 = vunpack.c.l.b16 %v650
      %v690 = vunpack.c.l.b16 %v651
      %v691 = vunpack.c.l.b16 %v652
      %v692 = vpack.c.b16 %v677, %v676
      %v693 = vpack.c.b16 %v679, %v678
      %v694 = vpack.c.b16 %v681, %v680
      %v695 = vpack.c.b16 %v683, %v682
      %v696 = vpack.c.b16 %v685, %v684
      %v697 = vpack.c.b16 %v687, %v686
      %v698 = vpack.c.b16 %v689, %v688
      %v699 = vpack.c.b16 %v691, %v690
      %708 = vmatprep.subr.bf16.mxu0 0
      %709 = vmatpush1.bf16.msra.mxu0 %v692
      %710 = vmatprep.subr.bf16.mxu0 0
      %711 = vmatpush1.bf16.msra.mxu0 %v693
      %712 = vmatprep.subr.bf16.mxu0 0
      %713 = vmatpush1.bf16.msra.mxu0 %v694
      %714 = vmatprep.subr.bf16.mxu0 0
      %715 = vmatpush1.bf16.msra.mxu0 %v695
      %716 = vmatprep.subr.bf16.mxu0 0
      %717 = vmatpush1.bf16.msra.mxu0 %v696
      %718 = vmatprep.subr.bf16.mxu0 0
      %719 = vmatpush1.bf16.msra.mxu0 %v697
      %720 = vmatprep.subr.bf16.mxu0 0
      %721 = vmatpush1.bf16.msra.mxu0 %v698
      %722 = vmatprep.subr.bf16.mxu0 0
      %723 = vmatpush1.bf16.msra.mxu0 %v699
      %724 = vmatprep.subr.bf16.mxu0 0
      %725 = vmatpush1.bf16.msra.mxu0 0
      %726 = vmatprep.subr.bf16.mxu0 0
      %727 = vmatpush1.bf16.msra.mxu0 0
      %728 = vmatprep.subr.bf16.mxu0 0
      %729 = vmatpush1.bf16.msra.mxu0 0
      %730 = vmatprep.subr.bf16.mxu0 0
      %731 = vmatpush1.bf16.msra.mxu0 0
      %732 = vmatprep.subr.bf16.mxu0 0
      %733 = vmatpush1.bf16.msra.mxu0 0
      %734 = vmatprep.subr.bf16.mxu0 0
      %735 = vmatpush1.bf16.msra.mxu0 0
      %736 = vmatprep.subr.bf16.mxu0 0
      %737 = vmatpush1.bf16.msra.mxu0 0
      %738 = vmatprep.subr.bf16.mxu0 0
      %739 = vmatpush1.bf16.msra.mxu0 0
      %740 = vmatprep.mubr.bf16.mxu0 0
      %741 = vmatmul.mubr.bf16.gmra.mrb[0].mxu0 %v621
      %v742 = vpop.f32.mrb[0].mxu0
      %v743 = vadd.f32 %v658, %v742
      %v744 = vpop.f32.mrb[0].mxu0
      %v745 = vpop.f32.mrb[0].mxu0
      %v746 = vadd.f32 %v658, %v745
      %v747 = vpop.f32.mrb[0].mxu0
      %748 = vmatprep.mubr.bf16.mxu0 0
      %749 = vmatmul.mubr.bf16.gmra.mrb[0].mxu0 %v622
      %v750 = vpop.f32.mrb[0].mxu0
      %v751 = vadd.f32 %v658, %v750
      %v752 = vpop.f32.mrb[0].mxu0
      %v753 = vpop.f32.mrb[0].mxu0
      %v754 = vadd.f32 %v658, %v753
      %v755 = vpop.f32.mrb[0].mxu0
      %756 = vmatprep.mubr.bf16.mxu0 0
      %757 = vmatmul.mubr.bf16.gmra.mrb[0].mxu0 %v623
      %v758 = vpop.f32.mrb[0].mxu0
      %v759 = vadd.f32 %v658, %v758
      %v760 = vpop.f32.mrb[0].mxu0
      %v761 = vpop.f32.mrb[0].mxu0
      %v762 = vadd.f32 %v658, %v761
      %v763 = vpop.f32.mrb[0].mxu0
      %764 = vmatprep.mubr.bf16.mxu0 0
      %765 = vmatmul.mubr.bf16.gmra.mrb[0].mxu0 %v624
      %v766 = vpop.f32.mrb[0].mxu0
      %v767 = vadd.f32 %v658, %v766
      %v768 = vpop.f32.mrb[0].mxu0
      %v769 = vpop.f32.mrb[0].mxu0
      %v770 = vadd.f32 %v658, %v769
      %v771 = vpop.f32.mrb[0].mxu0
      %772 = vmatprep.mubr.bf16.mxu0 0
      %773 = vmatmul.mubr.bf16.gmra.mrb[0].mxu0 %v625
      %v774 = vpop.f32.mrb[0].mxu0
      %v775 = vadd.f32 %v658, %v774
      %v776 = vpop.f32.mrb[0].mxu0
      %v777 = vpop.f32.mrb[0].mxu0
      %v778 = vadd.f32 %v658, %v777
      %v779 = vpop.f32.mrb[0].mxu0
      %780 = vmatprep.mubr.bf16.mxu0 0
      %781 = vmatmul.mubr.bf16.gmra.mrb[0].mxu0 %v626
      %v782 = vpop.f32.mrb[0].mxu0
      %v783 = vadd.f32 %v658, %v782
      %v784 = vpop.f32.mrb[0].mxu0
      %v785 = vpop.f32.mrb[0].mxu0
      %v786 = vadd.f32 %v658, %v785
      %v787 = vpop.f32.mrb[0].mxu0
      %788 = vmatprep.mubr.bf16.mxu0 0
      %789 = vmatmul.mubr.bf16.gmra.mrb[0].mxu0 %v627
      %v790 = vpop.f32.mrb[0].mxu0
      %v791 = vadd.f32 %v658, %v790
      %v792 = vpop.f32.mrb[0].mxu0
      %v793 = vpop.f32.mrb[0].mxu0
      %v794 = vadd.f32 %v658, %v793
      %v795 = vpop.f32.mrb[0].mxu0
      %796 = vmatprep.mubr.bf16.mxu0 0
      %797 = vmatmul.mubr.bf16.gmra.mrb[0].mxu0 %v628
      %v798 = vpop.f32.mrb[0].mxu0
      %v799 = vadd.f32 %v658, %v798
      %v800 = vpop.f32.mrb[0].mxu0
      %v801 = vpop.f32.mrb[0].mxu0
      %v802 = vadd.f32 %v658, %v801
      %v803 = vpop.f32.mrb[0].mxu0
      %804 = vmatprep.mubr.bf16.mxu0 0
      %805 = vmatmul.mubr.bf16.gmra.mrb[0].mxu0 %v629
      %v806 = vpop.f32.mrb[0].mxu0
      %v807 = vadd.f32 %v658, %v806
      %v808 = vpop.f32.mrb[0].mxu0
      %v809 = vpop.f32.mrb[0].mxu0
      %v810 = vadd.f32 %v658, %v809
      %v811 = vpop.f32.mrb[0].mxu0
      %812 = vmatprep.mubr.bf16.mxu0 0
      %813 = vmatmul.mubr.bf16.gmra.mrb[0].mxu0 %v630
      %v814 = vpop.f32.mrb[0].mxu0
      %v815 = vadd.f32 %v658, %v814
      %v816 = vpop.f32.mrb[0].mxu0
      %v817 = vpop.f32.mrb[0].mxu0
      %v818 = vadd.f32 %v658, %v817
      %v819 = vpop.f32.mrb[0].mxu0
      %820 = vmatprep.mubr.bf16.mxu0 0
      %821 = vmatmul.mubr.bf16.gmra.mrb[0].mxu0 %v631
      %v822 = vpop.f32.mrb[0].mxu0
      %v823 = vadd.f32 %v658, %v822
      %v824 = vpop.f32.mrb[0].mxu0
      %v825 = vpop.f32.mrb[0].mxu0
      %v826 = vadd.f32 %v658, %v825
      %v827 = vpop.f32.mrb[0].mxu0
      %828 = vmatprep.mubr.bf16.mxu0 0
      %829 = vmatmul.mubr.bf16.gmra.mrb[0].mxu0 %v632
      %v830 = vpop.f32.mrb[0].mxu0
      %v831 = vadd.f32 %v658, %v830
      %v832 = vpop.f32.mrb[0].mxu0
      %v833 = vpop.f32.mrb[0].mxu0
      %v834 = vadd.f32 %v658, %v833
      %v835 = vpop.f32.mrb[0].mxu0
      %836 = vmatprep.mubr.bf16.mxu0 0
      %837 = vmatmul.mubr.bf16.gmra.mrb[0].mxu0 %v633
      %v838 = vpop.f32.mrb[0].mxu0
      %v839 = vadd.f32 %v658, %v838
      %v840 = vpop.f32.mrb[0].mxu0
      %v841 = vpop.f32.mrb[0].mxu0
      %v842 = vadd.f32 %v658, %v841
      %v843 = vpop.f32.mrb[0].mxu0
      %844 = vmatprep.mubr.bf16.mxu0 0
      %845 = vmatmul.mubr.bf16.gmra.mrb[0].mxu0 %v634
      %v846 = vpop.f32.mrb[0].mxu0
      %v847 = vadd.f32 %v658, %v846
      %v848 = vpop.f32.mrb[0].mxu0
      %v849 = vpop.f32.mrb[0].mxu0
      %v850 = vadd.f32 %v658, %v849
      %v851 = vpop.f32.mrb[0].mxu0
      %852 = vmatprep.mubr.bf16.mxu0 0
      %853 = vmatmul.mubr.bf16.gmra.mrb[0].mxu0 %v635
      %v854 = vpop.f32.mrb[0].mxu0
      %v855 = vadd.f32 %v658, %v854
      %v856 = vpop.f32.mrb[0].mxu0
      %v857 = vpop.f32.mrb[0].mxu0
      %v858 = vadd.f32 %v658, %v857
      %v859 = vpop.f32.mrb[0].mxu0
      %860 = vmatprep.mubr.bf16.mxu0 0
      %861 = vmatmul.mubr.bf16.gmra.mrb[0].mxu0 %v636
      %v862 = vpop.f32.mrb[0].mxu0
      %v863 = vadd.f32 %v658, %v862
      %v864 = vpop.f32.mrb[0].mxu0
      %v865 = vpop.f32.mrb[0].mxu0
      %v866 = vadd.f32 %v658, %v865
      %v867 = vpop.f32.mrb[0].mxu0
      %868 = vdwg.mxu0
      %v869 = vmax.f32 %v743, 0.0
      %v870 = vmax.f32 %v746, 0.0
      %v871 = vmax.f32 %v751, 0.0
      %v872 = vmax.f32 %v754, 0.0
      %v873 = vmax.f32 %v759, 0.0
      %v874 = vmax.f32 %v762, 0.0
      %v875 = vmax.f32 %v767, 0.0
      %v876 = vmax.f32 %v770, 0.0
      %v877 = vmax.f32 %v775, 0.0
      %v878 = vmax.f32 %v778, 0.0
      %v879 = vmax.f32 %v783, 0.0
      %v880 = vmax.f32 %v786, 0.0
      %v881 = vmax.f32 %v791, 0.0
      %v882 = vmax.f32 %v794, 0.0
      %v883 = vmax.f32 %v799, 0.0
      %v884 = vmax.f32 %v802, 0.0
      %v885 = vmax.f32 %v807, 0.0
      %v886 = vmax.f32 %v810, 0.0
      %v887 = vmax.f32 %v815, 0.0
      %v888 = vmax.f32 %v818, 0.0
      %v889 = vmax.f32 %v823, 0.0
      %v890 = vmax.f32 %v826, 0.0
      %v891 = vmax.f32 %v831, 0.0
      %v892 = vmax.f32 %v834, 0.0
      %v893 = vmax.f32 %v839, 0.0
      %v894 = vmax.f32 %v842, 0.0
      %v895 = vmax.f32 %v847, 0.0
      %v896 = vmax.f32 %v850, 0.0
      %v897 = vmax.f32 %v855, 0.0
      %v898 = vmax.f32 %v858, 0.0
      %v899 = vmax.f32 %v863, 0.0
      %v900 = vmax.f32 %v866, 0.0
      %901 = vst [vmem:[%s226] sm:$0xff] %v869
      %902 = vst [vmem:[%s226 + $0x8] sm:$0xff] %v870
      %903 = vst [vmem:[%s226 + $0x10] sm:$0xff] %v871
      %904 = vst [vmem:[%s226 + $0x18] sm:$0xff] %v872
      %905 = vst [vmem:[%s226 + $0x20] sm:$0xff] %v873
      %906 = vst [vmem:[%s226 + $0x28] sm:$0xff] %v874
      %907 = vst [vmem:[%s226 + $0x30] sm:$0xff] %v875
      %908 = vst [vmem:[%s226 + $0x38] sm:$0xff] %v876
      %909 = vst [vmem:[%s226 + $0x40] sm:$0xff] %v877
      %910 = vst [vmem:[%s226 + $0x48] sm:$0xff] %v878
      %911 = vst [vmem:[%s226 + $0x50] sm:$0xff] %v879
      %912 = vst [vmem:[%s226 + $0x58] sm:$0xff] %v880
      %913 = vst [vmem:[%s226 + $0x60] sm:$0xff] %v881
      %914 = vst [vmem:[%s226 + $0x68] sm:$0xff] %v882
      %915 = vst [vmem:[%s226 + $0x70] sm:$0xff] %v883
      %916 = vst [vmem:[%s226 + $0x78] sm:$0xff] %v884
      %917 = vst [vmem:[%s226 + $0x80] sm:$0xff] %v885
      %918 = vst [vmem:[%s226 + $0x88] sm:$0xff] %v886
      %919 = vst [vmem:[%s226 + $0x90] sm:$0xff] %v887
      %920 = vst [vmem:[%s226 + $0x98] sm:$0xff] %v888
      %921 = vst [vmem:[%s226 + $0xa0] sm:$0xff] %v889
      %922 = vst [vmem:[%s226 + $0xa8] sm:$0xff] %v890
      %923 = vst [vmem:[%s226 + $0xb0] sm:$0xff] %v891
      %924 = vst [vmem:[%s226 + $0xb8] sm:$0xff] %v892
      %925 = vst [vmem:[%s226 + $0xc0] sm:$0xff] %v893
      %926 = vst [vmem:[%s226 + $0xc8] sm:$0xff] %v894
      %927 = vst [vmem:[%s226 + $0xd0] sm:$0xff] %v895
      %928 = vst [vmem:[%s226 + $0xd8] sm:$0xff] %v896
      %929 = vst [vmem:[%s226 + $0xe0] sm:$0xff] %v897
      %930 = vst [vmem:[%s226 + $0xe8] sm:$0xff] %v898
      %931 = vst [vmem:[%s226 + $0xf0] sm:$0xff] %v899
      %932 = vst [vmem:[%s226 + $0xf8] sm:$0xff] %v900
      %s933 = smul.u32 32, %s16
      %p934 = scmp.lt.s32.totalorder %s933, 63
      %s935 = scalar_select %p934, %s933, 63
      %s936 = smul.addr %s935, 8
      %s937 = scalar_lea.vmem %s5, %s936
      // Predicated region
      $region41: #{encoder_forward.1} parent=39 // pred_check
        %p938 = pneg %p144
      $region42: #{encoder_forward.1} parent=39 // pred_check_branch
        %940 = sbr.rel (%p938) target = $region44
      $region43: #{encoder_forward.1} parent=39 // pred_region
        %s941 = smul.u32 32, %s16
      $region44: #{encoder_forward.1} parent=39 // pred_fallthru
        _
    $region40: #{encoder_forward.1} parent=5 // pred_fallthru
      _
    %p942 = scmp.le.s32.totalorder 2, %s11
    // Predicated region
    $region45: #{encoder_forward.1} parent=5 // pred_check
      %p943 = pneg %p942
    $region46: #{encoder_forward.1} parent=5 // pred_check_branch
      %945 = sbr.rel (%p943) target = $region48
    $region47: #{encoder_forward.1} parent=5 // pred_region
      %s946 = ssub.s32 %s11, 2
      // Predicated region
      $region49: #{encoder_forward.1} parent=47 // pred_check
        %p947 = pneg %p150
      $region50: #{encoder_forward.1} parent=47 // pred_check_branch
        %949 = sbr.rel (%p947) target = $region52
      $region51: #{encoder_forward.1} parent=47 // pred_region
        %s950 = smul.u32 32, %s17
        %p951 = scmp.lt.s32.totalorder %s950, 63
        %s952 = scalar_select %p951, %s950, 63
        %s953 = smul.addr %s952, 8
        %s954 = scalar_lea.vmem %s5, %s953
      $region52: #{encoder_forward.1} parent=47 // pred_fallthru
        _
    $region48: #{encoder_forward.1} parent=5 // pred_fallthru
      _
  $region6: #{encoder_forward.1} parent=0 // loop_footer
    %s15 = sadd.s32 1, %s11
  $region7: #{encoder_forward.1} parent=0 // loop_footer_branch
    %10 = sbr.rel target = $region3
  $region8: #{encoder_forward.1} parent=0 // loop_exit
    _

</llo_original>
